<compile_context>
chip_gen: v7x
topology: tpu7x:2x2x1
jax: 0.10.0
libtpu: 0.0.40
codegen_flags: <defaults>
</compile_context>

<pallas_src>
import functools

import jax
import jax.numpy as jnp
from jax.experimental import pallas as pl
from jax.experimental.pallas import tpu as pltpu


def _round_up(x, m):
    return (x + m - 1) // m * m


def _block_masks(tm, n_pad, n_valid, block_rows):
    """Column-validity mask and self-pair-exclusion mask for this row block."""
    row = (jax.lax.broadcasted_iota(jnp.int32, (tm, n_pad), 0)
           + pl.program_id(0) * block_rows)
    col = jax.lax.broadcasted_iota(jnp.int32, (tm, n_pad), 1)
    valid = col < n_valid                               # drop padded contrast cols
    logits_mask = jnp.logical_and(row != col, valid)    # also drop self-pairs
    return valid, logits_mask


def _row_block_loss(logits, valid, logits_mask, pos_mask, sim,
                    temperature, base_temperature):
    """Shared (TM, Npad) -> (TM, 1) SupCon row reduction (f32)."""
    big_neg = jnp.float32(-1e30)
    # row max over the *valid* columns, incl. the self pair (matches torch)
    row_max = jnp.max(jnp.where(valid, logits, big_neg), axis=1, keepdims=True)
    stable = logits - row_max
    # fold diagonal/padding exclusion into the exp argument (exp -> 0 there)
    exp_logits = jnp.exp(jnp.where(logits_mask, stable, big_neg))
    denom = jnp.sum(exp_logits, axis=1, keepdims=True)
    log_prob = stable - jnp.log(denom)
    pos_sum = jnp.sum(pos_mask * log_prob, axis=1, keepdims=True)
    pos_cnt = jnp.sum(pos_mask, axis=1, keepdims=True)
    pos_cnt = jnp.where(pos_cnt == 0.0, jnp.float32(1.0), pos_cnt)
    mean_log_prob_pos = (pos_sum / pos_cnt) * (1.0 - sim)
    return (-(temperature / base_temperature)) * mean_log_prob_pos


def _logits_block(a_ref, c_ref, temperature):
    # Contract the last dim of both operands: the transpose is folded into the
    # MXU operand feed, no (D, N) transposed temporary is materialized.
    acc = jax.lax.dot_general(
        a_ref[...], c_ref[...],
        dimension_numbers=(((1,), (1,)), ((), ())),
        preferred_element_type=jnp.float32)
    return acc * jnp.float32(1.0 / temperature)


def _supcon_labels_kernel(a_ref, c_ref, la_ref, lc_ref, sim_ref, out_ref, *,
                          temperature, base_temperature, n_valid, block_rows):
    logits = _logits_block(a_ref, c_ref, temperature)       # (TM, Npad) f32
    tm, n_pad = logits.shape
    valid, logits_mask = _block_masks(tm, n_pad, n_valid, block_rows)
    # positive-pair mask rebuilt in-kernel from labels (no N x N mask DMA)
    pos = jnp.logical_and(la_ref[...] == lc_ref[...], logits_mask)
    out_ref[...] = _row_block_loss(logits, valid, logits_mask,
                                   pos.astype(jnp.float32), sim_ref[...],
                                   temperature, base_temperature)


def _supcon_mask_kernel(a_ref, c_ref, mask_ref, sim_ref, out_ref, *,
                        temperature, base_temperature, n_valid, block_rows):
    logits = _logits_block(a_ref, c_ref, temperature)
    tm, n_pad = logits.shape
    valid, logits_mask = _block_masks(tm, n_pad, n_valid, block_rows)
    pos = mask_ref[...] * logits_mask.astype(jnp.float32)
    out_ref[...] = _row_block_loss(logits, valid, logits_mask, pos,
                                   sim_ref[...], temperature, base_temperature)


def _compiler_params(n_pad, d_pad, tm, itemsize, extra_block_bytes=0):
    # Footprint-based scoped-VMEM request (resident contrast + double-buffered
    # row blocks + logits-sized temporaries).  Clamped so the toy/default case
    # stays at the 32 MiB default and huge cases never request > 100 MiB
    # (configs that big should lower TM / stream the contrast matrix anyway).
    resident = n_pad * d_pad * itemsize + n_pad * 4
    per_block = tm * d_pad * itemsize + 3 * tm * 4 + extra_block_bytes
    temporaries = 6 * tm * n_pad * 4
    est = 2 * resident + 4 * per_block + temporaries + (2 << 20)
    vmem_limit = int(min(max(est, 32 << 20), 100 << 20))
    return pltpu.CompilerParams(dimension_semantics=("parallel",),
                                vmem_limit_bytes=vmem_limit)


def supcon_loss(features, labels=None, mask=None, similary=None,
                temperature=0.07, contrast_mode='all', base_temperature=0.07,
                matmul_dtype=jnp.bfloat16):
    """Pallas port of SupConLoss.forward (contrast_mode 'all' and 'one')."""
    if features.ndim < 3:
        raise ValueError("`features` needs to be [bsz, n_views, ...]")
    if features.ndim > 3:
        features = features.reshape(features.shape[0], features.shape[1], -1)
    if labels is not None and mask is not None:
        raise ValueError("Cannot define both `labels` and `mask`")

    bsz, n_views, dim = features.shape
    n = n_views * bsz
    if contrast_mode == 'all':
        n_anchor = n
    elif contrast_mode == 'one':
        n_anchor = bsz
    else:
        raise ValueError("Unknown mode: {}".format(contrast_mode))

    # contrast_feature == torch.cat(torch.unbind(features, dim=1), dim=0)
    cf = jnp.transpose(features, (1, 0, 2)).reshape(n, dim).astype(jnp.float32)
    anchors = cf[:n_anchor]       # 'one': == features[:, 0]; 'all': == cf

    # similary -> per-anchor column of length n_anchor (view-major)
    if similary is None:
        sim = jnp.zeros((n_anchor, 1), jnp.float32)
    else:
        sim = jnp.asarray(similary, jnp.float32).reshape(-1, 1)
        if sim.shape[0] == 1:
            sim = jnp.broadcast_to(sim, (n_anchor, 1))
        if sim.shape[0] != n_anchor:
            raise ValueError("similary must broadcast against the anchor count")

    # lane/sublane-friendly padding
    tm = 128 if n_anchor >= 256 else _round_up(n_anchor, 8)   # anchor row tile
    m_pad = _round_up(n_anchor, tm)
    n_pad = _round_up(n, 128)                                 # lane-dense columns
    d_pad = _round_up(dim, 128)
    num_blocks = m_pad // tm

    cf_p = jnp.zeros((n_pad, d_pad), jnp.float32).at[:n, :dim].set(cf)
    cf_p = cf_p.astype(matmul_dtype)
    an_p = jnp.zeros((m_pad, d_pad), jnp.float32).at[:n_anchor, :dim].set(anchors)
    an_p = an_p.astype(matmul_dtype)
    sim_p = jnp.zeros((m_pad, 1), jnp.float32).at[:n_anchor, :].set(sim)
    itemsize = jnp.dtype(matmul_dtype).itemsize

    feat_specs = [
        pl.BlockSpec((tm, d_pad), lambda i: (i, 0)),       # anchor row block
        pl.BlockSpec((n_pad, d_pad), lambda i: (0, 0)),    # full contrast (resident)
    ]
    sim_spec = pl.BlockSpec((tm, 1), lambda i: (i, 0))
    out_spec = pl.BlockSpec((tm, 1), lambda i: (i, 0))
    out_shape = jax.ShapeDtypeStruct((m_pad, 1), jnp.float32)

    if mask is None:
        if labels is None:
            lab = jnp.arange(bsz, dtype=jnp.int32)          # SimCLR: eye(bsz)
        else:
            lab = jnp.asarray(labels).reshape(-1).astype(jnp.int32)
            if lab.shape[0] != bsz:
                raise ValueError("Num of labels does not match num of features")
        lab_n = jnp.tile(lab, (n_views,))                   # view-major, length n
        lab_col = (jnp.full((m_pad, 1), -1, jnp.int32)
                   .at[:n_anchor, 0].set(lab_n[:n_anchor]))
        lab_row = jnp.full((1, n_pad), -2, jnp.int32).at[0, :n].set(lab_n)

        kernel = functools.partial(_supcon_labels_kernel,
                                   temperature=float(temperature),
                                   base_temperature=float(base_temperature),
                                   n_valid=n, block_rows=tm)
        in_specs = feat_specs + [
            pl.BlockSpec((tm, 1), lambda i: (i, 0)),        # anchor labels
            pl.BlockSpec((1, n_pad), lambda i: (0, 0)),     # contrast labels
            sim_spec,
        ]
        args = (an_p, cf_p, lab_col, lab_row, sim_p)
        extra_block_bytes = 0
    else:
        # An explicit (possibly asymmetric) mask cannot be rebuilt from labels;
        # this path streams the tiled mask in pipelined row blocks.
        anchor_count = n_views if contrast_mode == 'all' else 1
        mask_t = jnp.tile(jnp.asarray(mask, jnp.float32), (anchor_count, n_views))
        mask_p = jnp.zeros((m_pad, n_pad), jnp.float32).at[:n_anchor, :n].set(mask_t)
        kernel = functools.partial(_supcon_mask_kernel,
                                   temperature=float(temperature),
                                   base_temperature=float(base_temperature),
                                   n_valid=n, block_rows=tm)
        in_specs = feat_specs + [
            pl.BlockSpec((tm, n_pad), lambda i: (i, 0)),    # mask row block
            sim_spec,
        ]
        args = (an_p, cf_p, mask_p, sim_p)
        extra_block_bytes = 2 * tm * n_pad * 4

    per_anchor = pl.pallas_call(
        kernel,
        out_shape=out_shape,
        grid_spec=pltpu.PrefetchScalarGridSpec(
            num_scalar_prefetch=0,
            grid=(num_blocks,),
            in_specs=in_specs,
            out_specs=out_spec),
        compiler_params=_compiler_params(n_pad, d_pad, tm, itemsize,
                                         extra_block_bytes),
    )(*args)

    # loss.view(anchor_count, batch_size).mean() == mean over the real anchors
    return jnp.sum(per_anchor[:n_anchor, 0]) / jnp.float32(n_anchor)


def _supcon_loss_ref(features, labels=None, mask=None, similary=None,
                     temperature=0.07, contrast_mode='all',
                     base_temperature=0.07, matmul_dtype=jnp.float32):
    """Pure-JAX reference mirroring the PyTorch code."""
    bsz, n_views, dim = features.shape
    n = n_views * bsz
    if labels is None and mask is None:
        mask = jnp.eye(bsz, dtype=jnp.float32)
    elif labels is not None:
        lab = jnp.asarray(labels).reshape(-1, 1)
        mask = (lab == lab.T).astype(jnp.float32)
    else:
        mask = jnp.asarray(mask, jnp.float32)
    cf = jnp.transpose(features, (1, 0, 2)).reshape(n, dim).astype(jnp.float32)
    if contrast_mode == 'one':
        af = features[:, 0].astype(jnp.float32)
        anchor_count = 1
    else:
        af = cf
        anchor_count = n_views
    n_anchor = anchor_count * bsz
    adc = jnp.matmul(af.astype(matmul_dtype), cf.astype(matmul_dtype).T,
                     preferred_element_type=jnp.float32) * (1.0 / temperature)
    logits = adc - jnp.max(adc, axis=1, keepdims=True)
    mask = jnp.tile(mask, (anchor_count, n_views))
    idx = jnp.arange(n_anchor)
    logits_mask = jnp.ones_like(mask).at[idx, idx].set(0.0)
    mask = mask * logits_mask
    exp_logits = jnp.exp(logits) * logits_mask
    log_prob = logits - jnp.log(jnp.sum(exp_logits, axis=1, keepdims=True))
    mask_sum = jnp.sum(mask, axis=1)
    mask_sum = jnp.where(mask_sum == 0, jnp.ones_like(mask_sum), mask_sum)
    mlpp = jnp.sum(mask * log_prob, axis=1) / mask_sum
    if similary is None:
        sim = jnp.zeros((n_anchor,), jnp.float32)
    else:
        sim = jnp.asarray(similary, jnp.float32).reshape(-1)
    mlpp = mlpp * (1.0 - sim)
    loss = -(temperature / base_temperature) * mlpp
    return loss.reshape(anchor_count, bsz).mean()


if __name__ == "__main__":
    key = jax.random.PRNGKey(0)
    k1, k2, k3 = jax.random.split(key, 3)

    bsz, n_views, dim = 8, 2, 32
    # L2-normalized features as in typical SupCon usage
    features = jax.random.normal(k1, (bsz, n_views, dim), dtype=jnp.float32)
    features = features / jnp.linalg.norm(features, axis=-1, keepdims=True)
    labels = jax.random.randint(k2, (bsz,), 0, 2, dtype=jnp.int32)
    similary = jax.random.uniform(k3, (bsz * n_views,), dtype=jnp.float32)

    # 1) f32 Gram matmul, labels path: tight check against the pure-JAX reference
    loss_f32 = supcon_loss(features, labels=labels, similary=similary,
                           matmul_dtype=jnp.float32)
    loss_f32 = jax.block_until_ready(loss_f32)
    ref_f32 = _supcon_loss_ref(features, labels=labels, similary=similary,
                               matmul_dtype=jnp.float32)
    assert jnp.allclose(loss_f32, ref_f32, rtol=1e-4, atol=1e-4), (loss_f32, ref_f32)

    # 2) explicit-mask path (same positives as the labels path here)
    mask_b = (labels.reshape(-1, 1) == labels.reshape(1, -1)).astype(jnp.float32)
    loss_mask = supcon_loss(features, mask=mask_b, similary=similary,
                            matmul_dtype=jnp.float32)
    loss_mask = jax.block_until_ready(loss_mask)
    assert jnp.allclose(loss_mask, ref_f32, rtol=1e-4, atol=1e-4), (loss_mask, ref_f32)

    # 3) SimCLR path (no labels, no mask)
    loss_simclr = supcon_loss(features, similary=similary, matmul_dtype=jnp.float32)
    loss_simclr = jax.block_until_ready(loss_simclr)
    ref_simclr = _supcon_loss_ref(features, similary=similary,
                                  matmul_dtype=jnp.float32)
    assert jnp.allclose(loss_simclr, ref_simclr, rtol=1e-4, atol=1e-4), (
        loss_simclr, ref_simclr)

    # 4) contrast_mode='one' (anchor = view 0 only; similary has length bsz)
    sim_one = similary[:bsz]
    loss_one = supcon_loss(features, labels=labels, similary=sim_one,
                           contrast_mode='one', matmul_dtype=jnp.float32)
    loss_one = jax.block_until_ready(loss_one)
    ref_one = _supcon_loss_ref(features, labels=labels, similary=sim_one,
                               contrast_mode='one', matmul_dtype=jnp.float32)
    assert jnp.allclose(loss_one, ref_one, rtol=1e-4, atol=1e-4), (loss_one, ref_one)

    # 5) default production config: bf16 Gram matmul with f32 accumulation
    loss_bf16 = supcon_loss(features, labels=labels, similary=similary)
    loss_bf16 = jax.block_until_ready(loss_bf16)
    ref_bf16 = _supcon_loss_ref(features, labels=labels, similary=similary,
                                matmul_dtype=jnp.bfloat16)
    assert jnp.allclose(loss_bf16, ref_bf16, rtol=1e-3, atol=1e-3), (loss_bf16, ref_bf16)

    print("KERNEL_OK")
</pallas_src>

<mosaic_0001>
module attributes {stable_mosaic.version = 11 : i64} {
  func.func @_supcon_labels_kernel(%arg0: i32, %arg1: memref<16x128xf32, #tpu.memory_space<vmem>>, %arg2: memref<128x128xf32, #tpu.memory_space<vmem>>, %arg3: memref<16x1xi32, #tpu.memory_space<vmem>>, %arg4: memref<1x128xi32, #tpu.memory_space<vmem>>, %arg5: memref<16x1xf32, #tpu.memory_space<vmem>>, %arg6: memref<16x1xf32, #tpu.memory_space<vmem>>) attributes {dimension_semantics = [#tpu.dimension_semantics<parallel>], iteration_bounds = array<i64: 1>, scalar_prefetch = 0 : i64, scratch_operands = 0 : i64, tpu.core_type = #tpu.core_type<tc>, window_params = [{transform_indices = @transform_0, window_bounds = array<i64: 16, 128>}, {pipeline_mode = #tpu.pipeline_mode<synchronous>, transform_indices = @transform_1, window_bounds = array<i64: 128, 128>}, {transform_indices = @transform_2, window_bounds = array<i64: 16, 1>}, {pipeline_mode = #tpu.pipeline_mode<synchronous>, transform_indices = @transform_3, window_bounds = array<i64: 1, 128>}, {transform_indices = @transform_4, window_bounds = array<i64: 16, 1>}, {transform_indices = @transform_5, window_bounds = array<i64: 16, 1>}]} {
    %c0 = arith.constant 0 : index
    %c0_0 = arith.constant 0 : index
    %0 = vector.load %arg1[%c0, %c0_0] : memref<16x128xf32, #tpu.memory_space<vmem>>, vector<16x128xf32>
    %c0_1 = arith.constant 0 : index
    %c0_2 = arith.constant 0 : index
    %1 = vector.load %arg2[%c0_1, %c0_2] : memref<128x128xf32, #tpu.memory_space<vmem>>, vector<128x128xf32>
    %cst = arith.constant dense<0.000000e+00> : vector<16x128xf32>
    %2 = tpu.matmul %0, %1, %cst {dimension_numbers = #tpu.dot_dimension_numbers<[1], [1], [0], [0], [0, 0, 1, 0], [], []>} : vector<16x128xf32>, vector<128x128xf32>, vector<16x128xf32> -> vector<16x128xf32>
    %cst_3 = arith.constant 14.2857141 : f32
    %3 = vector.broadcast %cst_3 : f32 to vector<16x128xf32>
    %4 = arith.mulf %2, %3 : vector<16x128xf32>
    %5 = tpu.iota {dimensions = array<i32: 0>} : vector<16x128xi32>
    %c16_i32 = arith.constant 16 : i32
    %6 = arith.muli %arg0, %c16_i32 : i32
    %7 = vector.broadcast %6 : i32 to vector<16x128xi32>
    %8 = arith.addi %5, %7 : vector<16x128xi32>
    %9 = tpu.iota {dimensions = array<i32: 1>} : vector<16x128xi32>
    %c16_i32_4 = arith.constant 16 : i32
    %10 = vector.broadcast %c16_i32_4 : i32 to vector<16x128xi32>
    %11 = arith.cmpi slt, %9, %10 : vector<16x128xi32>
    %12 = arith.cmpi ne, %8, %9 : vector<16x128xi32>
    %13 = arith.andi %12, %11 : vector<16x128xi1>
    %c0_5 = arith.constant 0 : index
    %c0_6 = arith.constant 0 : index
    %14 = vector.load %arg3[%c0_5, %c0_6] : memref<16x1xi32, #tpu.memory_space<vmem>>, vector<16x1xi32>
    %c0_7 = arith.constant 0 : index
    %c0_8 = arith.constant 0 : index
    %15 = vector.load %arg4[%c0_7, %c0_8] : memref<1x128xi32, #tpu.memory_space<vmem>>, vector<1x128xi32>
    %16 = vector.broadcast %14 : vector<16x1xi32> to vector<16x128xi32>
    %17 = vector.broadcast %15 : vector<1x128xi32> to vector<16x128xi32>
    %18 = arith.cmpi eq, %16, %17 : vector<16x128xi32>
    %19 = arith.andi %18, %13 : vector<16x128xi1>
    %20 = arith.extui %19 : vector<16x128xi1> to vector<16x128xi32>
    %21 = arith.sitofp %20 : vector<16x128xi32> to vector<16x128xf32>
    %c0_9 = arith.constant 0 : index
    %c0_10 = arith.constant 0 : index
    %22 = vector.load %arg5[%c0_9, %c0_10] : memref<16x1xf32, #tpu.memory_space<vmem>>, vector<16x1xf32>
    %cst_11 = arith.constant -1.000000e+30 : f32
    %23 = vector.broadcast %cst_11 : f32 to vector<16x128xf32>
    %24 = arith.select %11, %4, %23 : vector<16x128xi1>, vector<16x128xf32>
    %cst_12 = arith.constant dense<0xFF800000> : vector<16xf32>
    %25 = vector.multi_reduction <maximumf>, %24, %cst_12 [1] : vector<16x128xf32> to vector<16xf32>
    %26 = vector.shape_cast %25 : vector<16xf32> to vector<16x1xf32>
    %27 = vector.broadcast %26 : vector<16x1xf32> to vector<16x128xf32>
    %28 = arith.subf %4, %27 : vector<16x128xf32>
    %cst_13 = arith.constant -1.000000e+30 : f32
    %29 = vector.broadcast %cst_13 : f32 to vector<16x128xf32>
    %30 = arith.select %13, %28, %29 : vector<16x128xi1>, vector<16x128xf32>
    %31 = math.exp %30 : vector<16x128xf32>
    %cst_14 = arith.constant dense<0.000000e+00> : vector<16xf32>
    %32 = vector.multi_reduction <add>, %31, %cst_14 [1] : vector<16x128xf32> to vector<16xf32>
    %33 = vector.shape_cast %32 : vector<16xf32> to vector<16x1xf32>
    %34 = math.log %33 : vector<16x1xf32>
    %35 = vector.broadcast %34 : vector<16x1xf32> to vector<16x128xf32>
    %36 = arith.subf %28, %35 : vector<16x128xf32>
    %37 = arith.mulf %21, %36 : vector<16x128xf32>
    %cst_15 = arith.constant dense<0.000000e+00> : vector<16xf32>
    %38 = vector.multi_reduction <add>, %37, %cst_15 [1] : vector<16x128xf32> to vector<16xf32>
    %39 = vector.shape_cast %38 : vector<16xf32> to vector<16x1xf32>
    %cst_16 = arith.constant dense<0.000000e+00> : vector<16xf32>
    %40 = vector.multi_reduction <add>, %21, %cst_16 [1] : vector<16x128xf32> to vector<16xf32>
    %41 = vector.shape_cast %40 : vector<16xf32> to vector<16x1xf32>
    %cst_17 = arith.constant 0.000000e+00 : f32
    %42 = vector.broadcast %cst_17 : f32 to vector<16x1xf32>
    %43 = arith.cmpf oeq, %41, %42 : vector<16x1xf32>
    %cst_18 = arith.constant 1.000000e+00 : f32
    %44 = vector.broadcast %cst_18 : f32 to vector<16x1xf32>
    %45 = arith.select %43, %44, %41 : vector<16x1xi1>, vector<16x1xf32>
    %46 = arith.divf %39, %45 : vector<16x1xf32>
    %cst_19 = arith.constant 1.000000e+00 : f32
    %47 = vector.broadcast %cst_19 : f32 to vector<16x1xf32>
    %48 = arith.subf %47, %22 : vector<16x1xf32>
    %49 = arith.mulf %46, %48 : vector<16x1xf32>
    %cst_20 = arith.constant -1.000000e+00 : f32
    %50 = vector.broadcast %cst_20 : f32 to vector<16x1xf32>
    %51 = arith.mulf %50, %49 : vector<16x1xf32>
    %c0_21 = arith.constant 0 : index
    %c0_22 = arith.constant 0 : index
    %52 = vector.load %arg6[%c0_21, %c0_22] : memref<16x1xf32, #tpu.memory_space<vmem>>, vector<16x1xf32>
    tpu.vector_store %arg6[%c0_21, %c0_22], %51 {strides = array<i32>} : memref<16x1xf32, #tpu.memory_space<vmem>>, vector<16x1xf32>,
    return
  }
  func.func @transform_0(%arg0: i32) -> (i32, i32) {
    %c0_i32 = arith.constant 0 : i32
    %c0_i32_0 = arith.constant 0 : i32
    return %arg0, %c0_i32 : i32, i32
  }
  func.func @transform_1(%arg0: i32) -> (i32, i32) {
    %c0_i32 = arith.constant 0 : i32
    %c0_i32_0 = arith.constant 0 : i32
    %c0_i32_1 = arith.constant 0 : i32
    return %c0_i32, %c0_i32_0 : i32, i32
  }
  func.func @transform_2(%arg0: i32) -> (i32, i32) {
    %c0_i32 = arith.constant 0 : i32
    %c0_i32_0 = arith.constant 0 : i32
    return %arg0, %c0_i32 : i32, i32
  }
  func.func @transform_3(%arg0: i32) -> (i32, i32) {
    %c0_i32 = arith.constant 0 : i32
    %c0_i32_0 = arith.constant 0 : i32
    %c0_i32_1 = arith.constant 0 : i32
    return %c0_i32, %c0_i32_0 : i32, i32
  }
  func.func @transform_4(%arg0: i32) -> (i32, i32) {
    %c0_i32 = arith.constant 0 : i32
    %c0_i32_0 = arith.constant 0 : i32
    return %arg0, %c0_i32 : i32, i32
  }
  func.func @transform_5(%arg0: i32) -> (i32, i32) {
    %c0_i32 = arith.constant 0 : i32
    %c0_i32_0 = arith.constant 0 : i32
    return %arg0, %c0_i32 : i32, i32
  }
}

</mosaic_0001>

<llo_original>
// kernel: tpu_custom_call.1
$region0: #{tpu_custom_call.1}
  #allocation0 [shape = 'u32[]', space=smem, size = 0x4, offset = 0x4, fixed_abs, tag = 'smem constant byte address 0x4 - core index']
  #allocation1 [shape = 'u32[144,128]{1,0:T(1,128)}', space=vmem, size = 0x12000, scoped, tag = 'internal scratch']
  %s0 = inlined_call_operand.vmem [shape: f32[16,128], index: 0, kind: input, shape index: {}]
  %s1 = inlined_call_operand.hbm [shape: f32[128,128], index: 1, kind: input, shape index: {}]
  %s2 = inlined_call_operand.vmem [shape: s32[16,1], index: 2, kind: input, shape index: {}]
  %s3 = inlined_call_operand.vmem [shape: s32[1,128], index: 3, kind: input, shape index: {}]
  %s4 = inlined_call_operand.vmem [shape: f32[16,1], index: 4, kind: input, shape index: {}]
  %s5 = inlined_call_operand.vmem [shape: f32[16,1], index: 5, kind: output, shape index: {}]
  %s6 = sld [smem:[#allocation0]]
  $region34: #{tpu_custom_call.1} parent=0
    _
  %s8 = ssub.s32 1, %s6
  %s9 = scalar_select 0, %s8, %s6
  $region1: #{tpu_custom_call.1} parent=0
    #allocation2 [shape = 'u8[65536]{0}', space=vmem, size = 0x10000, scoped, tag = 'input window, operand 1, single buffered']
    #allocation3 [shape = 's32[1]{0}', space=sflag, size = 0x4, scoped, tag = 'scoped memory for tpu_custom_call.1']
    %10 = vsyncpa [#allocation3], 0
    // Predicated region
    $region2: #{tpu_custom_call.1} parent=1 // pred_check
      _
    $region3: #{tpu_custom_call.1} parent=1 // pred_check_branch
      %12 = sbr.rel (0) target = $region5
    $region4: #{tpu_custom_call.1} parent=1 // pred_region
      _
    $region5: #{tpu_custom_call.1} parent=1 // pred_fallthru
      _
    // Predicated region
    $region6: #{tpu_custom_call.1} parent=1 // pred_check
      _
    $region7: #{tpu_custom_call.1} parent=1 // pred_check_branch
      %14 = sbr.rel (0) target = $region9
    $region8: #{tpu_custom_call.1} parent=1 // pred_region
      %s16 = ssub.s32 2048, 2048
      %17 = vsyncadd [#allocation3], %s16
      %s18 = sshll.u32 [#allocation2], 4
      %s19 = int_to_ptr.vmem [resolvable:$true] %s18
      %24 = dma.hbm_to_vmem [thread:$0]  %s1, 2048, %s19, [#allocation3], 128, 128, 8
    $region9: #{tpu_custom_call.1} parent=1 // pred_fallthru
      _
    // Predicated region
    $region10: #{tpu_custom_call.1} parent=1 // pred_check
      _
    $region11: #{tpu_custom_call.1} parent=1 // pred_check_branch
      %26 = sbr.rel (0) target = $region13
    $region12: #{tpu_custom_call.1} parent=1 // pred_region
      _
    $region13: #{tpu_custom_call.1} parent=1 // pred_fallthru
      _
    // Predicated region
    $region14: #{tpu_custom_call.1} parent=1 // pred_check
      _
    $region15: #{tpu_custom_call.1} parent=1 // pred_check_branch
      %28 = sbr.rel (0) target = $region17
    $region16: #{tpu_custom_call.1} parent=1 // pred_region
      _
    $region17: #{tpu_custom_call.1} parent=1 // pred_fallthru
      _
    // Predicated region
    $region18: #{tpu_custom_call.1} parent=1 // pred_check
      _
    $region19: #{tpu_custom_call.1} parent=1 // pred_check_branch
      %30 = sbr.rel (0) target = $region21
    $region20: #{tpu_custom_call.1} parent=1 // pred_region
      _
    $region21: #{tpu_custom_call.1} parent=1 // pred_fallthru
      _
    // Predicated region
    $region22: #{tpu_custom_call.1} parent=1 // pred_check
      _
    $region23: #{tpu_custom_call.1} parent=1 // pred_check_branch
      %32 = sbr.rel (0) target = $region25
    $region24: #{tpu_custom_call.1} parent=1 // pred_region
      %33 = dma.done [#allocation3], 2048
    $region25: #{tpu_custom_call.1} parent=1 // pred_fallthru
      _
    %v34 = vld [vmem:[%s0] sm:$0xff]
    %v35 = vld [vmem:[%s0 + $0x8] sm:$0xff]
    %v36 = vld [vmem:[#allocation2] sm:$0xff]
    %v37 = vld [vmem:[#allocation2 + $0x8] sm:$0xff]
    %v38 = vld [vmem:[#allocation2 + $0x10] sm:$0xff]
    %v39 = vld [vmem:[#allocation2 + $0x18] sm:$0xff]
    %v40 = vld [vmem:[#allocation2 + $0x20] sm:$0xff]
    %v41 = vld [vmem:[#allocation2 + $0x28] sm:$0xff]
    %v42 = vld [vmem:[#allocation2 + $0x30] sm:$0xff]
    %v43 = vld [vmem:[#allocation2 + $0x38] sm:$0xff]
    %v44 = vld [vmem:[#allocation2 + $0x40] sm:$0xff]
    %v45 = vld [vmem:[#allocation2 + $0x48] sm:$0xff]
    %v46 = vld [vmem:[#allocation2 + $0x50] sm:$0xff]
    %v47 = vld [vmem:[#allocation2 + $0x58] sm:$0xff]
    %v48 = vld [vmem:[#allocation2 + $0x60] sm:$0xff]
    %v49 = vld [vmem:[#allocation2 + $0x68] sm:$0xff]
    %v50 = vld [vmem:[#allocation2 + $0x70] sm:$0xff]
    %v51 = vld [vmem:[#allocation2 + $0x78] sm:$0xff]
    %52 = vmatprep.subr.mxu0 0.0
    %53 = vmatpush1.xpose.msra.mxu0 %v36
    %54 = vmatprep.subr.mxu0 0.0
    %55 = vmatpush1.xpose.msra.mxu0 %v37
    %56 = vmatprep.subr.mxu0 0.0
    %57 = vmatpush1.xpose.msra.mxu0 %v38
    %58 = vmatprep.subr.mxu0 0.0
    %59 = vmatpush1.xpose.msra.mxu0 %v39
    %60 = vmatprep.subr.mxu0 0.0
    %61 = vmatpush1.xpose.msra.mxu0 %v40
    %62 = vmatprep.subr.mxu0 0.0
    %63 = vmatpush1.xpose.msra.mxu0 %v41
    %64 = vmatprep.subr.mxu0 0.0
    %65 = vmatpush1.xpose.msra.mxu0 %v42
    %66 = vmatprep.subr.mxu0 0.0
    %67 = vmatpush1.xpose.msra.mxu0 %v43
    %68 = vmatprep.subr.mxu0 0.0
    %69 = vmatpush1.xpose.msra.mxu0 %v44
    %70 = vmatprep.subr.mxu0 0.0
    %71 = vmatpush1.xpose.msra.mxu0 %v45
    %72 = vmatprep.subr.mxu0 0.0
    %73 = vmatpush1.xpose.msra.mxu0 %v46
    %74 = vmatprep.subr.mxu0 0.0
    %75 = vmatpush1.xpose.msra.mxu0 %v47
    %76 = vmatprep.subr.mxu0 0.0
    %77 = vmatpush1.xpose.msra.mxu0 %v48
    %78 = vmatprep.subr.mxu0 0.0
    %79 = vmatpush1.xpose.msra.mxu0 %v49
    %80 = vmatprep.subr.mxu0 0.0
    %81 = vmatpush1.xpose.msra.mxu0 %v50
    %82 = vmatprep.subr.mxu0 0.0
    %83 = vmatpush1.xpose.msra.mxu0 %v51
    %84 = vmatprep.subr.mxu0 0.0
    %85 = vmatpush1.xpose.msra.mxu0 0.0
    %86 = vmatprep.subr.mxu0 0.0
    %87 = vmatpush1.xpose.msra.mxu0 0.0
    %88 = vmatprep.subr.mxu0 0.0
    %89 = vmatpush1.xpose.msra.mxu0 0.0
    %90 = vmatprep.subr.mxu0 0.0
    %91 = vmatpush1.xpose.msra.mxu0 0.0
    %92 = vmatprep.subr.mxu0 0.0
    %93 = vmatpush1.xpose.msra.mxu0 0.0
    %94 = vmatprep.subr.mxu0 0.0
    %95 = vmatpush1.xpose.msra.mxu0 0.0
    %96 = vmatprep.subr.mxu0 0.0
    %97 = vmatpush1.xpose.msra.mxu0 0.0
    %98 = vmatprep.subr.mxu0 0.0
    %99 = vmatpush1.xpose.msra.mxu0 0.0
    %100 = vmatprep.subr.mxu0 0.0
    %101 = vmatpush1.xpose.msra.mxu0 0.0
    %102 = vmatprep.subr.mxu0 0.0
    %103 = vmatpush1.xpose.msra.mxu0 0.0
    %104 = vmatprep.subr.mxu0 0.0
    %105 = vmatpush1.xpose.msra.mxu0 0.0
    %106 = vmatprep.subr.mxu0 0.0
    %107 = vmatpush1.xpose.msra.mxu0 0.0
    %108 = vmatprep.subr.mxu0 0.0
    %109 = vmatpush1.xpose.msra.mxu0 0.0
    %110 = vmatprep.subr.mxu0 0.0
    %111 = vmatpush1.xpose.msra.mxu0 0.0
    %112 = vmatprep.subr.mxu0 0.0
    %113 = vmatpush1.xpose.msra.mxu0 0.0
    %114 = vmatprep.subr.mxu0 0.0
    %115 = vmatpush1.xpose.msra.mxu0 0.0
    %116 = vmatprep.mubr.f32.mxu0 0.0
    %117 = vmatmul.mubr.f32.gmra.mrb[0].mxu0 %v34
    %v118 = vpop.f32.mrb[0].mxu0
    %v119 = vadd.f32 0.0, %v118
    %v120 = vpop.f32.mrb[0].mxu0
    %121 = vmatprep.mubr.f32.mxu0 0.0
    %122 = vmatmul.mubr.f32.gmra.mrb[0].mxu0 %v35
    %v123 = vpop.f32.mrb[0].mxu0
    %v124 = vadd.f32 0.0, %v123
    %v125 = vpop.f32.mrb[0].mxu0
    %126 = vdwg.mxu0
    %v127 = vmul.f32 %v119, 14.285714
    %v128 = vmul.f32 %v124, 14.285714
    %v129 = vlaneseq
    %v130 = vshrl.u32 %v129, 7
    %v131 = vadd.s32 %v130, 8
    %s132 = smul.u32 0, 16
    %v133 = vstv %s132
    %v134 = vadd.s32 %v130, %v133
    %v135 = vadd.s32 %v131, %v133
    %v136 = vlaneseq
    %v137 = vand.u32 %v136, 127
    %vm138 = vcmp.lt.s32.totalorder %v137, 16
    %vm139 = vcmp.ne.s32.totalorder %v134, %v137
    %vm140 = vcmp.ne.s32.totalorder %v135, %v137
    %vm141 = vmand %vm139, %vm138
    %vm142 = vmand %vm140, %vm138
    %v143 = vld [vmem:[%s2] sm:$0xff]
    %v144 = vld [vmem:[%s2 + $0x8] sm:$0xff]
    %v145 = vld [vmem:[%s3] sm:$0x1]
    %146 = vset.pattern.permute.xlu0 0
    %147 = vperm.xlu0 %146, %v143
    %v148 = vpop.permute.xlu0 %147
    %149 = vset.pattern.permute.xlu0 0
    %150 = vperm.xlu0 %149, %v144
    %v151 = vpop.permute.xlu0 %150
    %v152 = vlaneseq
    %v153 = vshrl.u32 %v152, 7
    %v154 = vsub.s32 0, %v153
    %v155 = vrot.slane %v145, %v154
    %vm156 = vcmp.eq.s32.totalorder %v148, %v155
    %vm157 = vcmp.eq.s32.totalorder %v151, %v155
    %vm158 = vmand %vm156, %vm141
    %vm159 = vmand %vm157, %vm142
    %v160 = vsel %vm158, 1, 0
    %v161 = vsel %vm159, 1, 0
    %v162 = vcvt.s32.f32 %v160
    %v163 = vcvt.s32.f32 %v161
    %v164 = vld [vmem:[%s4] sm:$0xff]
    %v165 = vld [vmem:[%s4 + $0x8] sm:$0xff]
    %v166 = vsel %vm138, %v127, -1e+30
    %v167 = vsel %vm138, %v128, -1e+30
    %168 = vmax.xlane.f32.xlu0 %v166
    %v169 = vpop.xlane.xlu0 %168
    %170 = vmax.xlane.f32.xlu0 %v167
    %v171 = vpop.xlane.xlu0 %170
    %v172 = vsub.f32 %v127, %v169
    %v173 = vsub.f32 %v128, %v171
    %v174 = vsel %vm141, %v172, -1e+30
    %v175 = vsel %vm142, %v173, -1e+30
    %v176 = vmul.f32 %v174, 1.442695
    %v177 = vpow.pop %v176
    %v178 = vmul.f32 %v175, 1.442695
    %v179 = vpow.pop %v178
    %180 = vadd.xlane.f32.xlu0 %v177
    %v181 = vpop.xlane.xlu0 %180
    %182 = vadd.xlane.f32.xlu0 %v179
    %v183 = vpop.xlane.xlu0 %182
    %v184 = vlog2.pop %v181
    %v185 = vmul.f32 %v184, 0.6931472
    %v186 = vlog2.pop %v183
    %v187 = vmul.f32 %v186, 0.6931472
    %v188 = vsub.f32 %v172, %v185
    %v189 = vsub.f32 %v173, %v187
    %v190 = vmul.f32 %v162, %v188
    %v191 = vmul.f32 %v163, %v189
    %192 = vadd.xlane.f32.xlu0 %v190
    %v193 = vpop.xlane.xlu0 %192
    %194 = vadd.xlane.f32.xlu0 %v191
    %v195 = vpop.xlane.xlu0 %194
    %196 = vadd.xlane.f32.xlu0 %v162
    %v197 = vpop.xlane.xlu0 %196
    %198 = vadd.xlane.f32.xlu0 %v163
    %v199 = vpop.xlane.xlu0 %198
    %vm200 = vcmp.eq.f32.partialorder %v197, 0.0
    %vm201 = vcmp.eq.f32.partialorder %v199, 0.0
    %v202 = vsel %vm200, 1.0, %v197
    %v203 = vsel %vm201, 1.0, %v199
    %v204 = vrcp.pop %v202
    %v205 = vmul.f32 %v193, %v204
    %v206 = vrcp.pop %v203
    %v207 = vmul.f32 %v195, %v206
    %v208 = vsub.f32 1.0, %v164
    %v209 = vsub.f32 1.0, %v165
    %v210 = vmul.f32 %v205, %v208
    %v211 = vmul.f32 %v207, %v209
    %v212 = vmul.f32 %v210, -1.0
    %v213 = vmul.f32 %v211, -1.0
    %vm214 = vcmask 7168
    %215 = vst.msk [vmem:[%s5] sm:$0xff] %vm214, %v212
    %216 = vst.msk [vmem:[%s5 + $0x8] sm:$0xff] %vm214, %v213
    // Predicated region
    $region26: #{tpu_custom_call.1} parent=1 // pred_check
      _
    $region27: #{tpu_custom_call.1} parent=1 // pred_check_branch
      %218 = sbr.rel (0) target = $region29
    $region28: #{tpu_custom_call.1} parent=1 // pred_region
      _
    $region29: #{tpu_custom_call.1} parent=1 // pred_fallthru
      _
    // Predicated region
    $region30: #{tpu_custom_call.1} parent=1 // pred_check
      _
    $region31: #{tpu_custom_call.1} parent=1 // pred_check_branch
      %220 = sbr.rel (0) target = $region33
    $region32: #{tpu_custom_call.1} parent=1 // pred_region
      _
    $region33: #{tpu_custom_call.1} parent=1 // pred_fallthru
      _
    %221 = vsyncpa [#allocation3], 1

</llo_original>
